<compile_context>
chip_gen: v6e
topology: v6e:2x2x1
jax: 0.10.0
libtpu: 0.0.40
codegen_flags: <defaults>
</compile_context>

<pallas_src>
import itertools
import math

import jax
import jax.numpy as jnp
from jax.experimental import pallas as pl
from jax.experimental.pallas import tpu as pltpu


LANE = 128  # lane width: powerset axis and speaker axis are padded to this


def powerset_adapter_kernel(frames_ref, w_ref, b_ref, mapping_ref, out_ref):
    # frames: (TM, F) f32   w: (F, LANE) f32   b: (1, LANE) f32
    # mapping: (LANE, LANE) bf16   out: (TM, LANE) f32
    #
    # Stand-in segmentation head: linear layer (log_softmax omitted — argmax
    # invariant).  Pad lanes of b are -1e30 so argmax never picks a pad class.
    logits = jnp.dot(frames_ref[...], w_ref[...],
                     preferred_element_type=jnp.float32) + b_ref[...]

    # Powerset.to_multilabel (soft=False): one_hot(argmax) @ mapping,
    # first-index tie-break (matches torch.argmax / jnp.argmax).
    iota = jax.lax.broadcasted_iota(jnp.int32, logits.shape, 1)
    mx = jnp.max(logits, axis=-1, keepdims=True)
    big = jnp.int32(2 ** 30)
    idx = jnp.min(jnp.where(logits == mx, iota, big), axis=-1, keepdims=True)
    # 0/1 values are exact in bf16; one nonzero per row, so bf16 MXU result is
    # bit-identical to f32 while using the native bf16 datapath on v6e/v7x.
    onehot = (iota == idx).astype(jnp.bfloat16)

    out_ref[...] = jnp.dot(onehot, mapping_ref[...],
                           preferred_element_type=jnp.float32)


def build_powerset_mapping(num_classes: int, max_set_size: int) -> jnp.ndarray:
    """Exactly mirrors pyannote's Powerset.build_mapping()."""
    num_powerset = sum(math.comb(num_classes, k) for k in range(max_set_size + 1))
    mapping = jnp.zeros((num_powerset, num_classes), dtype=jnp.float32)
    k = 0
    for set_size in range(max_set_size + 1):
        for subset in itertools.combinations(range(num_classes), set_size):
            if subset:
                mapping = mapping.at[k, list(subset)].set(1.0)
            k += 1
    return mapping


def make_powerset_adapter(w, b, mapping, *, tm=128):
    """Build a jitted adapter.

    w: (F, P) f32 stand-in head weights; b: (1, P) f32 bias;
    mapping: (P, C) f32 powerset->multilabel mapping.
    Returns fn(frames: (R, F) f32) -> (R, C) f32.

    Padding of the static operands is done ONCE here (not per call):
      * w:       zero-pad columns  P -> LANE
      * b:       pad columns with -1e30 so padded powerset classes never win argmax
      * mapping: zero-pad to (LANE, LANE), stored in bf16 (exact for 0/1 entries)
    """
    F, P = w.shape
    _, C = mapping.shape
    assert P <= LANE and C <= LANE

    w_pad = jnp.zeros((F, LANE), jnp.float32).at[:, :P].set(w.astype(jnp.float32))
    b_pad = jnp.full((1, LANE), -1e30, jnp.float32).at[:, :P].set(
        b.astype(jnp.float32))
    map_pad = jnp.zeros((LANE, LANE), jnp.bfloat16).at[:P, :C].set(
        mapping.astype(jnp.bfloat16))

    @jax.jit
    def adapter(frames):
        R, F_in = frames.shape
        assert F_in == F
        tile = min(tm, R)
        assert R % tile == 0 and tile % 8 == 0

        out_pad = pl.pallas_call(
            powerset_adapter_kernel,
            out_shape=jax.ShapeDtypeStruct((R, LANE), jnp.float32),
            grid_spec=pltpu.PrefetchScalarGridSpec(
                num_scalar_prefetch=0,
                grid=(R // tile,),
                in_specs=[
                    pl.BlockSpec((tile, F), lambda i: (i, 0)),
                    # Constant index_map: DMA'd once, VMEM-resident across steps.
                    pl.BlockSpec((F, LANE), lambda i: (0, 0)),
                    pl.BlockSpec((1, LANE), lambda i: (0, 0)),
                    pl.BlockSpec((LANE, LANE), lambda i: (0, 0)),
                ],
                out_specs=pl.BlockSpec((tile, LANE), lambda i: (i, 0)),
            ),
            compiler_params=pltpu.CompilerParams(
                dimension_semantics=("parallel",)),
        )(frames, w_pad, b_pad, map_pad)

        # Lane-dense kernel output; slice to real speaker count inside the jit.
        return out_pad[:, :C]

    return adapter


def reference(frames, w, b, mapping):
    logits = frames @ w + b
    logits = jax.nn.log_softmax(logits, axis=-1)   # argmax-invariant; kept for fidelity
    idx = jnp.argmax(logits, axis=-1)
    onehot = jax.nn.one_hot(idx, w.shape[1], dtype=jnp.float32)
    return onehot @ mapping


if __name__ == "__main__":
    # Powerset config: 4 speakers per chunk, up to 2 simultaneous per frame.
    max_speakers_per_chunk = 4          # len(specs.classes)
    max_speakers_per_frame = 2          # specs.powerset_max_classes
    mapping = build_powerset_mapping(max_speakers_per_chunk, max_speakers_per_frame)
    P = mapping.shape[0]                # 1 + 4 + 6 = 11 powerset classes

    B, T, F = 2, 256, 128               # batch, frames per chunk, samples per frame
    key = jax.random.PRNGKey(0)
    k_wave, k_w, k_b = jax.random.split(key, 3)

    # waveform: (batch, channel=1, samples) as the segmentation model expects
    waveform = jax.random.normal(k_wave, (B, 1, T * F), dtype=jnp.float32)
    frames = waveform.reshape(B * T, F)                 # framing (glue)

    w = jax.random.normal(k_w, (F, P), dtype=jnp.float32) * 0.1
    b = jax.random.normal(k_b, (1, P), dtype=jnp.float32) * 0.1

    # Build once (pads hoisted, jitted); call per streaming chunk.
    adapter = make_powerset_adapter(w, b, mapping, tm=128)  # grid=4: 2 steps/TC on v7x
    out = adapter(frames)
    out = jax.block_until_ready(out)
    multilabel = out.reshape(B, T, max_speakers_per_chunk)  # (batch, frames, speakers)

    ref = reference(frames, w, b, mapping).reshape(B, T, max_speakers_per_chunk)
    assert multilabel.shape == (B, T, max_speakers_per_chunk)
    assert jnp.allclose(multilabel, ref), "mismatch vs pure-JAX reference"
    print("KERNEL_OK")
</pallas_src>

<mosaic_0001>
module attributes {stable_mosaic.version = 11 : i64} {
  func.func @powerset_adapter_kernel(%arg0: i32, %arg1: memref<128x128xf32, #tpu.memory_space<vmem>>, %arg2: memref<128x128xf32, #tpu.memory_space<vmem>>, %arg3: memref<1x128xf32, #tpu.memory_space<vmem>>, %arg4: memref<128x128xbf16, #tpu.memory_space<vmem>>, %arg5: memref<128x128xf32, #tpu.memory_space<vmem>>) attributes {dimension_semantics = [#tpu.dimension_semantics<parallel>], iteration_bounds = array<i64: 4>, scalar_prefetch = 0 : i64, scratch_operands = 0 : i64, tpu.core_type = #tpu.core_type<tc>, window_params = [{transform_indices = @transform_0, window_bounds = array<i64: 128, 128>}, {pipeline_mode = #tpu.pipeline_mode<synchronous>, transform_indices = @transform_1, window_bounds = array<i64: 128, 128>}, {pipeline_mode = #tpu.pipeline_mode<synchronous>, transform_indices = @transform_2, window_bounds = array<i64: 1, 128>}, {pipeline_mode = #tpu.pipeline_mode<synchronous>, transform_indices = @transform_3, window_bounds = array<i64: 128, 128>}, {transform_indices = @transform_4, window_bounds = array<i64: 128, 128>}]} {
    %c0 = arith.constant 0 : index
    %c0_0 = arith.constant 0 : index
    %0 = vector.load %arg1[%c0, %c0_0] : memref<128x128xf32, #tpu.memory_space<vmem>>, vector<128x128xf32>
    %c0_1 = arith.constant 0 : index
    %c0_2 = arith.constant 0 : index
    %1 = vector.load %arg2[%c0_1, %c0_2] : memref<128x128xf32, #tpu.memory_space<vmem>>, vector<128x128xf32>
    %cst = arith.constant dense<0.000000e+00> : vector<128x128xf32>
    %2 = tpu.matmul %0, %1, %cst {dimension_numbers = #tpu.dot_dimension_numbers<[1], [0], [0], [1], [0, 0, 1, 1], [], []>} : vector<128x128xf32>, vector<128x128xf32>, vector<128x128xf32> -> vector<128x128xf32>
    %c0_3 = arith.constant 0 : index
    %c0_4 = arith.constant 0 : index
    %3 = vector.load %arg3[%c0_3, %c0_4] : memref<1x128xf32, #tpu.memory_space<vmem>>, vector<1x128xf32>
    %4 = vector.broadcast %3 : vector<1x128xf32> to vector<128x128xf32>
    %5 = arith.addf %2, %4 : vector<128x128xf32>
    %6 = tpu.iota {dimensions = array<i32: 1>} : vector<128x128xi32>
    %cst_5 = arith.constant dense<0xFF800000> : vector<128xf32>
    %7 = vector.multi_reduction <maximumf>, %5, %cst_5 [1] : vector<128x128xf32> to vector<128xf32>
    %8 = vector.shape_cast %7 : vector<128xf32> to vector<128x1xf32>
    %9 = vector.broadcast %8 : vector<128x1xf32> to vector<128x128xf32>
    %10 = arith.cmpf oeq, %5, %9 : vector<128x128xf32>
    %c1073741824_i32 = arith.constant 1073741824 : i32
    %11 = vector.broadcast %c1073741824_i32 : i32 to vector<128x128xi32>
    %12 = arith.select %10, %6, %11 : vector<128x128xi1>, vector<128x128xi32>
    %cst_6 = arith.constant dense<2147483647> : vector<128xi32>
    %13 = vector.multi_reduction <minsi>, %12, %cst_6 [1] : vector<128x128xi32> to vector<128xi32>
    %14 = vector.shape_cast %13 : vector<128xi32> to vector<128x1xi32>
    %15 = vector.broadcast %14 : vector<128x1xi32> to vector<128x128xi32>
    %16 = arith.cmpi eq, %6, %15 : vector<128x128xi32>
    %17 = arith.extui %16 : vector<128x128xi1> to vector<128x128xi32>
    %18 = arith.sitofp %17 : vector<128x128xi32> to vector<128x128xf32>
    %19 = arith.truncf %18 : vector<128x128xf32> to vector<128x128xbf16>
    %c0_7 = arith.constant 0 : index
    %c0_8 = arith.constant 0 : index
    %20 = vector.load %arg4[%c0_7, %c0_8] : memref<128x128xbf16, #tpu.memory_space<vmem>>, vector<128x128xbf16>
    %cst_9 = arith.constant dense<0.000000e+00> : vector<128x128xf32>
    %21 = tpu.matmul %19, %20, %cst_9 {dimension_numbers = #tpu.dot_dimension_numbers<[1], [0], [0], [1], [0, 0, 1, 1], [], []>} : vector<128x128xbf16>, vector<128x128xbf16>, vector<128x128xf32> -> vector<128x128xf32>
    %c0_10 = arith.constant 0 : index
    %c0_11 = arith.constant 0 : index
    %22 = vector.load %arg5[%c0_10, %c0_11] : memref<128x128xf32, #tpu.memory_space<vmem>>, vector<128x128xf32>
    tpu.vector_store %arg5[%c0_10, %c0_11], %21 {strides = array<i32>} : memref<128x128xf32, #tpu.memory_space<vmem>>, vector<128x128xf32>,
    return
  }
  func.func @transform_0(%arg0: i32) -> (i32, i32) {
    %c0_i32 = arith.constant 0 : i32
    %c0_i32_0 = arith.constant 0 : i32
    return %arg0, %c0_i32 : i32, i32
  }
  func.func @transform_1(%arg0: i32) -> (i32, i32) {
    %c0_i32 = arith.constant 0 : i32
    %c0_i32_0 = arith.constant 0 : i32
    %c0_i32_1 = arith.constant 0 : i32
    return %c0_i32, %c0_i32_0 : i32, i32
  }
  func.func @transform_2(%arg0: i32) -> (i32, i32) {
    %c0_i32 = arith.constant 0 : i32
    %c0_i32_0 = arith.constant 0 : i32
    %c0_i32_1 = arith.constant 0 : i32
    return %c0_i32, %c0_i32_0 : i32, i32
  }
  func.func @transform_3(%arg0: i32) -> (i32, i32) {
    %c0_i32 = arith.constant 0 : i32
    %c0_i32_0 = arith.constant 0 : i32
    %c0_i32_1 = arith.constant 0 : i32
    return %c0_i32, %c0_i32_0 : i32, i32
  }
  func.func @transform_4(%arg0: i32) -> (i32, i32) {
    %c0_i32 = arith.constant 0 : i32
    %c0_i32_0 = arith.constant 0 : i32
    return %arg0, %c0_i32 : i32, i32
  }
}

</mosaic_0001>

<llo_original>
// kernel: adapter.1
$region0: #{adapter.1}
  #allocation0 [shape = 'u32[]', space=smem, size = 0x4, offset = 0x4, fixed_abs, tag = 'smem constant byte address 0x4 - core index']
  #allocation1 [shape = 'u32[144,128]{1,0:T(1,128)}', space=vmem, size = 0x12000, scoped, tag = 'internal scratch']
  %s0 = inlined_call_operand.hbm [shape: f32[512,128], index: 0, kind: input, shape index: {}]
  %s1 = inlined_call_operand.hbm [shape: f32[128,128], index: 1, kind: input, shape index: {}]
  %s2 = inlined_call_operand.vmem [shape: f32[1,128], index: 2, kind: input, shape index: {}]
  %s3 = inlined_call_operand.hbm [shape: bf16[128,128], index: 3, kind: input, shape index: {}]
  %s4 = inlined_call_operand.vmem [shape: f32[512,128], index: 4, kind: output, shape index: {}]
  %s5 = sld [smem:[#allocation0]]
  $region61: #{adapter.1} parent=0
    _
  %s7 = ssub.s32 1, %s5
  %s8 = scalar_select 0, %s7, %s5
  $region1: #{adapter.1} parent=0
    #allocation2 [shape = 'u8[131072]{0}', space=vmem, size = 0x20000, scoped, tag = 'input window, operand 0']
    #allocation3 [shape = 's32[2]{0}', space=sflag, size = 0x8, scoped, tag = 'scoped memory for adapter.1']
    #allocation4 [shape = 'u8[65536]{0}', space=vmem, size = 0x10000, scoped, tag = 'input window, operand 1, single buffered']
    #allocation5 [shape = 's32[1]{0}', space=sflag, size = 0x4, scoped, tag = 'scoped memory for adapter.1']
    #allocation6 [shape = 'u8[32768]{0}', space=vmem, size = 0x8000, scoped, tag = 'input window, operand 3, single buffered']
    %9 = vsyncpa [#allocation3], 0
    %s10 = scalar_lea.sflag [#allocation3], 1
    %11 = vsyncpa %s10, 0
    %12 = vsyncpa [#allocation5], 0
    loop: start=0, step=1, limit=6
    $region2: #{adapter.1} parent=1 // loop_pre_header
      _
    $region3: #{adapter.1} parent=1 // loop_header
      %s14 = sphi 0, %s18
      %p15 = scmp.ge.s32.totalorder %s14, 6
      %s24 = sphi 0, %s26
      %s27 = sphi 0, %s24
      %s28 = sphi 0, %s27
      %s44 = sphi 0, %s28
      %s48 = sphi 0, %s48
      %s50 = sphi 0, %s48
      %s51 = sphi 0, %s50
      %s65 = sphi 0, %s51
      %s69 = sphi 0, %s69
      %s71 = sphi 0, %s69
      %s72 = sphi 0, %s71
      %s86 = sphi 0, %s72
      %s90 = sphi 0, %s90
      %s92 = sphi 0, %s90
      %s93 = sphi 0, %s92
      %s107 = sphi 0, %s93
      %s113 = sphi 0, %s115
      %s116 = sphi 0, %s113
      %s117 = sphi 0, %s116
      %s133 = sphi 0, %s117
    $region4: #{adapter.1} parent=1 // loop_header_branch
      %17 = sbr.rel (%p15) target = $region8
    $region5: #{adapter.1} parent=1 // loop_body
      %s19 = ssub.s32 %s14, 1
      %s20 = ssub.s32 %s14, 2
      %s21 = sadd.s32 %s14, 1
      %s22 = ssub.s32 %s14, %s21
      %p23 = scmp.eq.s32.totalorder %s22, 0
      %s25 = sadd.s32 %s24, 1
      %s26 = scalar_select %p23, %s24, %s25
      %p29 = pneg %p23
      %p30 = scmp.eq.s32.totalorder %s14, 3
      %p31 = por %p29, %p30
      %p32 = scmp.ne.s32.totalorder %s24, %s27
      %p33 = scmp.eq.s32.totalorder %s14, 0
      %p34 = por %p32, %p33
      %p35 = scmp.ne.s32.totalorder %s24, %s27
      %p36 = scmp.eq.s32.totalorder %s19, 3
      %p37 = por %p35, %p36
      %p38 = scmp.ne.s32.totalorder %s27, %s28
      %p39 = scmp.eq.s32.totalorder %s19, 0
      %p40 = por %p38, %p39
      %p41 = scmp.ne.s32.totalorder %s27, %s28
      %p42 = scmp.eq.s32.totalorder %s20, 3
      %p43 = por %p41, %p42
      %p45 = scmp.ne.s32.totalorder %s28, %s44
      %p46 = scmp.eq.s32.totalorder %s20, 0
      %p47 = por %p45, %p46
      %s49 = sadd.s32 %s48, 1
      %p52 = scmp.eq.s32.totalorder %s14, 3
      %p53 = scmp.ne.s32.totalorder %s48, %s50
      %p54 = scmp.eq.s32.totalorder %s14, 0
      %p55 = por %p53, %p54
      %p56 = scmp.ne.s32.totalorder %s48, %s50
      %p57 = scmp.eq.s32.totalorder %s19, 3
      %p58 = por %p56, %p57
      %p59 = scmp.ne.s32.totalorder %s50, %s51
      %p60 = scmp.eq.s32.totalorder %s19, 0
      %p61 = por %p59, %p60
      %p62 = scmp.ne.s32.totalorder %s50, %s51
      %p63 = scmp.eq.s32.totalorder %s20, 3
      %p64 = por %p62, %p63
      %p66 = scmp.ne.s32.totalorder %s51, %s65
      %p67 = scmp.eq.s32.totalorder %s20, 0
      %p68 = por %p66, %p67
      %s70 = sadd.s32 %s69, 1
      %p73 = scmp.eq.s32.totalorder %s14, 3
      %p74 = scmp.ne.s32.totalorder %s69, %s71
      %p75 = scmp.eq.s32.totalorder %s14, 0
      %p76 = por %p74, %p75
      %p77 = scmp.ne.s32.totalorder %s69, %s71
      %p78 = scmp.eq.s32.totalorder %s19, 3
      %p79 = por %p77, %p78
      %p80 = scmp.ne.s32.totalorder %s71, %s72
      %p81 = scmp.eq.s32.totalorder %s19, 0
      %p82 = por %p80, %p81
      %p83 = scmp.ne.s32.totalorder %s71, %s72
      %p84 = scmp.eq.s32.totalorder %s20, 3
      %p85 = por %p83, %p84
      %p87 = scmp.ne.s32.totalorder %s72, %s86
      %p88 = scmp.eq.s32.totalorder %s20, 0
      %p89 = por %p87, %p88
      %s91 = sadd.s32 %s90, 1
      %p94 = scmp.eq.s32.totalorder %s14, 3
      %p95 = scmp.ne.s32.totalorder %s90, %s92
      %p96 = scmp.eq.s32.totalorder %s14, 0
      %p97 = por %p95, %p96
      %p98 = scmp.ne.s32.totalorder %s90, %s92
      %p99 = scmp.eq.s32.totalorder %s19, 3
      %p100 = por %p98, %p99
      %p101 = scmp.ne.s32.totalorder %s92, %s93
      %p102 = scmp.eq.s32.totalorder %s19, 0
      %p103 = por %p101, %p102
      %p104 = scmp.ne.s32.totalorder %s92, %s93
      %p105 = scmp.eq.s32.totalorder %s20, 3
      %p106 = por %p104, %p105
      %p108 = scmp.ne.s32.totalorder %s93, %s107
      %p109 = scmp.eq.s32.totalorder %s20, 0
      %p110 = por %p108, %p109
      %s111 = ssub.s32 %s14, %s21
      %p112 = scmp.eq.s32.totalorder %s111, 0
      %s114 = sadd.s32 %s113, 1
      %s115 = scalar_select %p112, %s113, %s114
      %p118 = pneg %p112
      %p119 = scmp.eq.s32.totalorder %s14, 3
      %p120 = por %p118, %p119
      %p121 = scmp.ne.s32.totalorder %s113, %s116
      %p122 = scmp.eq.s32.totalorder %s14, 0
      %p123 = por %p121, %p122
      %p124 = scmp.ne.s32.totalorder %s113, %s116
      %p125 = scmp.eq.s32.totalorder %s19, 3
      %p126 = por %p124, %p125
      %p127 = scmp.ne.s32.totalorder %s116, %s117
      %p128 = scmp.eq.s32.totalorder %s19, 0
      %p129 = por %p127, %p128
      %p130 = scmp.ne.s32.totalorder %s116, %s117
      %p131 = scmp.eq.s32.totalorder %s20, 3
      %p132 = por %p130, %p131
      %p134 = scmp.ne.s32.totalorder %s117, %s133
      %p135 = scmp.eq.s32.totalorder %s20, 0
      %p136 = por %p134, %p135
      %p137 = scmp.le.s32.totalorder 1, %s14
      %p138 = scmp.lt.s32.totalorder %s14, 5
      %p139 = pnand %p137, %p138
      %p140 = pneg %p139
      // Predicated region
      $region9: #{adapter.1} parent=5 // pred_check
        _
      $region10: #{adapter.1} parent=5 // pred_check_branch
        %142 = sbr.rel (%p139) target = $region12
      $region11: #{adapter.1} parent=5 // pred_region
        %s143 = ssub.s32 %s14, 1
        // Predicated region
        $region13: #{adapter.1} parent=11 // pred_check
          %p144 = pneg %p61
        $region14: #{adapter.1} parent=11 // pred_check_branch
          %146 = sbr.rel (%p144) target = $region16
        $region15: #{adapter.1} parent=11 // pred_region
          %s148 = ssub.s32 2048, 2048
          %149 = vsyncadd [#allocation5], %s148
          %s150 = sshll.u32 [#allocation4], 4
          %s151 = int_to_ptr.vmem [resolvable:$true] %s150
          %156 = dma.hbm_to_vmem [thread:$0]  %s1, 2048, %s151, [#allocation5], 128, 128, 8
        $region16: #{adapter.1} parent=11 // pred_fallthru
          _
        // Predicated region
        $region17: #{adapter.1} parent=11 // pred_check
          %p157 = pneg %p82
        $region18: #{adapter.1} parent=11 // pred_check_branch
          %159 = sbr.rel (%p157) target = $region20
        $region19: #{adapter.1} parent=11 // pred_region
          _
        $region20: #{adapter.1} parent=11 // pred_fallthru
          _
        // Predicated region
        $region21: #{adapter.1} parent=11 // pred_check
          %p160 = pneg %p103
        $region22: #{adapter.1} parent=11 // pred_check_branch
          %162 = sbr.rel (%p160) target = $region24
        $region23: #{adapter.1} parent=11 // pred_region
          %s164 = ssub.s32 1024, 1024
          %165 = vsyncadd [#allocation5], %s164
          %s166 = sshll.u32 [#allocation6], 4
          %s167 = int_to_ptr.vmem [resolvable:$true] %s166
          %172 = dma.hbm_to_vmem [thread:$0]  %s3, 1024, %s167, [#allocation5], 64, 64, 4
        $region24: #{adapter.1} parent=11 // pred_fallthru
          _
      $region12: #{adapter.1} parent=5 // pred_fallthru
        _
      %p173 = scmp.lt.s32.totalorder %s14, 4
      // Predicated region
      $region25: #{adapter.1} parent=5 // pred_check
        %p174 = pneg %p173
      $region26: #{adapter.1} parent=5 // pred_check_branch
        %176 = sbr.rel (%p174) target = $region28
      $region27: #{adapter.1} parent=5 // pred_region
        // Predicated region
        $region29: #{adapter.1} parent=27 // pred_check
          %p177 = pneg %p34
        $region30: #{adapter.1} parent=27 // pred_check_branch
          %179 = sbr.rel (%p177) target = $region32
        $region31: #{adapter.1} parent=27 // pred_region
          %s180 = sand.u32 %s24, 1
          %s181 = scalar_lea.sflag [#allocation3], %s180
          %s182 = sand.u32 %s24, 1
          %s183 = smul.addr %s182, 128
          %s184 = scalar_lea.vmem [#allocation2], %s183
          %s185 = smul.u32 16, %s14
          %s187 = ssub.s32 2048, 2048
          %188 = vsyncadd %s181, %s187
          %s189 = smul.addr %s185, 128
          %s190 = scalar_lea.hbm %s0, %s189
          %s191 = sshll.u32 %s184, 4
          %s192 = int_to_ptr.vmem [resolvable:$true] %s191
          %197 = dma.hbm_to_vmem [thread:$0]  %s190, 2048, %s192, %s181, 128, 128, 8
        $region32: #{adapter.1} parent=27 // pred_fallthru
          _
      $region28: #{adapter.1} parent=5 // pred_fallthru
        _
      %p198 = scmp.le.s32.totalorder 1, %s14
      %p199 = scmp.lt.s32.totalorder %s14, 5
      %p200 = pnand %p198, %p199
      %p201 = pneg %p200
      // Predicated region
      $region33: #{adapter.1} parent=5 // pred_check
        _
      $region34: #{adapter.1} parent=5 // pred_check_branch
        %203 = sbr.rel (%p200) target = $region36
      $region35: #{adapter.1} parent=5 // pred_region
        %s204 = ssub.s32 %s14, 1
        %s205 = sand.u32 %s27, 1
        %s206 = scalar_lea.sflag [#allocation3], %s205
        %s207 = sand.u32 %s27, 1
        %s208 = smul.addr %s207, 128
        %s209 = scalar_lea.vmem [#allocation2], %s208
        // Predicated region
        $region37: #{adapter.1} parent=35 // pred_check
          %p210 = pneg %p40
        $region38: #{adapter.1} parent=35 // pred_check_branch
          %212 = sbr.rel (%p210) target = $region40
        $region39: #{adapter.1} parent=35 // pred_region
          %213 = dma.done %s206, 2048
        $region40: #{adapter.1} parent=35 // pred_fallthru
          _
        // Predicated region
        $region41: #{adapter.1} parent=35 // pred_check
          %p214 = pneg %p61
        $region42: #{adapter.1} parent=35 // pred_check_branch
          %216 = sbr.rel (%p214) target = $region44
        $region43: #{adapter.1} parent=35 // pred_region
          %217 = dma.done [#allocation5], 2048
        $region44: #{adapter.1} parent=35 // pred_fallthru
          _
        // Predicated region
        $region45: #{adapter.1} parent=35 // pred_check
          %p218 = pneg %p103
        $region46: #{adapter.1} parent=35 // pred_check_branch
          %220 = sbr.rel (%p218) target = $region48
        $region47: #{adapter.1} parent=35 // pred_region
          %221 = dma.done [#allocation5], 1024
        $region48: #{adapter.1} parent=35 // pred_fallthru
          _
        %s222 = sand.u32 %s27, 1
        %s223 = scalar_lea.sflag [#allocation3], %s222
        %s224 = sand.u32 %s27, 1
        %s225 = smul.addr %s224, 128
        %s226 = scalar_lea.vmem [#allocation2], %s225
        %p227 = pneg %p40
        %p228 = pneg %p37
        %p229 = pneg %p61
        %p230 = pneg %p58
        %p231 = pneg %p82
        %p232 = pneg %p79
        %p233 = pneg %p103
        %p234 = pneg %p100
        %p235 = pneg %p129
        %p236 = pneg %p126
        %s237 = smul.u32 16, %s19
        %p238 = scmp.lt.s32.totalorder %s237, 63
        %s239 = scalar_select %p238, %s237, 63
        %s240 = smul.addr %s239, 8
        %s241 = scalar_lea.vmem %s4, %s240
        %s242 = smul.u32 16, %s19
        %s243 = smul.u32 16, %s19
        %p244 = scmp.lt.s32.totalorder %s243, 63
        %s245 = scalar_select %p244, %s243, 63
        %s246 = smul.addr %s245, 8
        %s247 = scalar_lea.vmem %s4, %s246
        %s248 = smul.u32 16, %s19
        %v250 = vld [vmem:[%s209] sm:$0xff]
        %v251 = vld [vmem:[%s209 + $0x8] sm:$0xff]
        %v252 = vld [vmem:[%s209 + $0x10] sm:$0xff]
        %v253 = vld [vmem:[%s209 + $0x18] sm:$0xff]
        %v254 = vld [vmem:[%s209 + $0x20] sm:$0xff]
        %v255 = vld [vmem:[%s209 + $0x28] sm:$0xff]
        %v256 = vld [vmem:[%s209 + $0x30] sm:$0xff]
        %v257 = vld [vmem:[%s209 + $0x38] sm:$0xff]
        %v258 = vld [vmem:[%s209 + $0x40] sm:$0xff]
        %v259 = vld [vmem:[%s209 + $0x48] sm:$0xff]
        %v260 = vld [vmem:[%s209 + $0x50] sm:$0xff]
        %v261 = vld [vmem:[%s209 + $0x58] sm:$0xff]
        %v262 = vld [vmem:[%s209 + $0x60] sm:$0xff]
        %v263 = vld [vmem:[%s209 + $0x68] sm:$0xff]
        %v264 = vld [vmem:[%s209 + $0x70] sm:$0xff]
        %v265 = vld [vmem:[%s209 + $0x78] sm:$0xff]
        %v266 = vld [vmem:[#allocation4] sm:$0xff]
        %v267 = vld [vmem:[#allocation4 + $0x8] sm:$0xff]
        %v268 = vld [vmem:[#allocation4 + $0x10] sm:$0xff]
        %v269 = vld [vmem:[#allocation4 + $0x18] sm:$0xff]
        %v270 = vld [vmem:[#allocation4 + $0x20] sm:$0xff]
        %v271 = vld [vmem:[#allocation4 + $0x28] sm:$0xff]
        %v272 = vld [vmem:[#allocation4 + $0x30] sm:$0xff]
        %v273 = vld [vmem:[#allocation4 + $0x38] sm:$0xff]
        %v274 = vld [vmem:[#allocation4 + $0x40] sm:$0xff]
        %v275 = vld [vmem:[#allocation4 + $0x48] sm:$0xff]
        %v276 = vld [vmem:[#allocation4 + $0x50] sm:$0xff]
        %v277 = vld [vmem:[#allocation4 + $0x58] sm:$0xff]
        %v278 = vld [vmem:[#allocation4 + $0x60] sm:$0xff]
        %v279 = vld [vmem:[#allocation4 + $0x68] sm:$0xff]
        %v280 = vld [vmem:[#allocation4 + $0x70] sm:$0xff]
        %v281 = vld [vmem:[#allocation4 + $0x78] sm:$0xff]
        %v282 = vld [vmem:[%s2] sm:$0x1]
        %v284 = vlaneseq
        %v285 = vshrl.u32 %v284, 7
        %v286 = vsub.s32 0, %v285
        %v287 = vrot.slane %v282, %v286
        %289 = vmatprep.subr.mxu0 0.0
        %290 = vmatpush1.msra.mxu0 %v281
        %291 = vmatprep.subr.mxu0 0.0
        %292 = vmatpush1.msra.mxu0 %v280
        %293 = vmatprep.subr.mxu0 0.0
        %294 = vmatpush1.msra.mxu0 %v279
        %295 = vmatprep.subr.mxu0 0.0
        %296 = vmatpush1.msra.mxu0 %v278
        %297 = vmatprep.subr.mxu0 0.0
        %298 = vmatpush1.msra.mxu0 %v277
        %299 = vmatprep.subr.mxu0 0.0
        %300 = vmatpush1.msra.mxu0 %v276
        %301 = vmatprep.subr.mxu0 0.0
        %302 = vmatpush1.msra.mxu0 %v275
        %303 = vmatprep.subr.mxu0 0.0
        %304 = vmatpush1.msra.mxu0 %v274
        %305 = vmatprep.subr.mxu0 0.0
        %306 = vmatpush1.msra.mxu0 %v273
        %307 = vmatprep.subr.mxu0 0.0
        %308 = vmatpush1.msra.mxu0 %v272
        %309 = vmatprep.subr.mxu0 0.0
        %310 = vmatpush1.msra.mxu0 %v271
        %311 = vmatprep.subr.mxu0 0.0
        %312 = vmatpush1.msra.mxu0 %v270
        %313 = vmatprep.subr.mxu0 0.0
        %314 = vmatpush1.msra.mxu0 %v269
        %315 = vmatprep.subr.mxu0 0.0
        %316 = vmatpush1.msra.mxu0 %v268
        %317 = vmatprep.subr.mxu0 0.0
        %318 = vmatpush1.msra.mxu0 %v267
        %319 = vmatprep.subr.mxu0 0.0
        %320 = vmatpush1.msra.mxu0 %v266
        %321 = vmatprep.subr.mxu0 0.0
        %322 = vmatpush2.msra.mxu0 0.0
        %323 = vmatprep.subr.mxu0 0.0
        %324 = vmatpush2.msra.mxu0 0.0
        %325 = vmatprep.subr.mxu0 0.0
        %326 = vmatpush2.msra.mxu0 0.0
        %327 = vmatprep.subr.mxu0 0.0
        %328 = vmatpush2.msra.mxu0 0.0
        %329 = vmatprep.subr.mxu0 0.0
        %330 = vmatpush2.msra.mxu0 0.0
        %331 = vmatprep.subr.mxu0 0.0
        %332 = vmatpush2.msra.mxu0 0.0
        %333 = vmatprep.subr.mxu0 0.0
        %334 = vmatpush2.msra.mxu0 0.0
        %335 = vmatprep.subr.mxu0 0.0
        %336 = vmatpush2.msra.mxu0 0.0
        %337 = vmatprep.subr.mxu0 0.0
        %338 = vmatpush2.msra.mxu0 0.0
        %339 = vmatprep.subr.mxu0 0.0
        %340 = vmatpush2.msra.mxu0 0.0
        %341 = vmatprep.subr.mxu0 0.0
        %342 = vmatpush2.msra.mxu0 0.0
        %343 = vmatprep.subr.mxu0 0.0
        %344 = vmatpush2.msra.mxu0 0.0
        %345 = vmatprep.subr.mxu0 0.0
        %346 = vmatpush2.msra.mxu0 0.0
        %347 = vmatprep.subr.mxu0 0.0
        %348 = vmatpush2.msra.mxu0 0.0
        %349 = vmatprep.subr.mxu0 0.0
        %350 = vmatpush2.msra.mxu0 0.0
        %351 = vmatprep.subr.mxu0 0.0
        %352 = vmatpush2.msra.mxu0 0.0
        %353 = vmatprep.mubr.f32.mxu0 0.0
        %354 = vmatmul.mubr.f32.gmra.mxu0 %v250
        %v355 = vpop.f32.mrf.mxu0
        %v356 = vadd.f32 %v287, %v355
        %v357 = vpop.f32.mrf.mxu0
        %358 = vmatprep.mubr.f32.mxu0 0.0
        %359 = vmatmul.mubr.f32.gmra.mxu0 %v251
        %v360 = vpop.f32.mrf.mxu0
        %v361 = vadd.f32 %v287, %v360
        %v362 = vpop.f32.mrf.mxu0
        %363 = vmatprep.mubr.f32.mxu0 0.0
        %364 = vmatmul.mubr.f32.gmra.mxu0 %v252
        %v365 = vpop.f32.mrf.mxu0
        %v366 = vadd.f32 %v287, %v365
        %v367 = vpop.f32.mrf.mxu0
        %368 = vmatprep.mubr.f32.mxu0 0.0
        %369 = vmatmul.mubr.f32.gmra.mxu0 %v253
        %v370 = vpop.f32.mrf.mxu0
        %v371 = vadd.f32 %v287, %v370
        %v372 = vpop.f32.mrf.mxu0
        %373 = vmatprep.mubr.f32.mxu0 0.0
        %374 = vmatmul.mubr.f32.gmra.mxu0 %v254
        %v375 = vpop.f32.mrf.mxu0
        %v376 = vadd.f32 %v287, %v375
        %v377 = vpop.f32.mrf.mxu0
        %378 = vmatprep.mubr.f32.mxu0 0.0
        %379 = vmatmul.mubr.f32.gmra.mxu0 %v255
        %v380 = vpop.f32.mrf.mxu0
        %v381 = vadd.f32 %v287, %v380
        %v382 = vpop.f32.mrf.mxu0
        %383 = vmatprep.mubr.f32.mxu0 0.0
        %384 = vmatmul.mubr.f32.gmra.mxu0 %v256
        %v385 = vpop.f32.mrf.mxu0
        %v386 = vadd.f32 %v287, %v385
        %v387 = vpop.f32.mrf.mxu0
        %388 = vmatprep.mubr.f32.mxu0 0.0
        %389 = vmatmul.mubr.f32.gmra.mxu0 %v257
        %v390 = vpop.f32.mrf.mxu0
        %v391 = vadd.f32 %v287, %v390
        %v392 = vpop.f32.mrf.mxu0
        %393 = vmatprep.mubr.f32.mxu0 0.0
        %394 = vmatmul.mubr.f32.gmra.mxu0 %v258
        %v395 = vpop.f32.mrf.mxu0
        %v396 = vadd.f32 %v287, %v395
        %v397 = vpop.f32.mrf.mxu0
        %398 = vmatprep.mubr.f32.mxu0 0.0
        %399 = vmatmul.mubr.f32.gmra.mxu0 %v259
        %v400 = vpop.f32.mrf.mxu0
        %v401 = vadd.f32 %v287, %v400
        %v402 = vpop.f32.mrf.mxu0
        %403 = vmatprep.mubr.f32.mxu0 0.0
        %404 = vmatmul.mubr.f32.gmra.mxu0 %v260
        %v405 = vpop.f32.mrf.mxu0
        %v406 = vadd.f32 %v287, %v405
        %v407 = vpop.f32.mrf.mxu0
        %408 = vmatprep.mubr.f32.mxu0 0.0
        %409 = vmatmul.mubr.f32.gmra.mxu0 %v261
        %v410 = vpop.f32.mrf.mxu0
        %v411 = vadd.f32 %v287, %v410
        %v412 = vpop.f32.mrf.mxu0
        %413 = vmatprep.mubr.f32.mxu0 0.0
        %414 = vmatmul.mubr.f32.gmra.mxu0 %v262
        %v415 = vpop.f32.mrf.mxu0
        %v416 = vadd.f32 %v287, %v415
        %v417 = vpop.f32.mrf.mxu0
        %418 = vmatprep.mubr.f32.mxu0 0.0
        %419 = vmatmul.mubr.f32.gmra.mxu0 %v263
        %v420 = vpop.f32.mrf.mxu0
        %v421 = vadd.f32 %v287, %v420
        %v422 = vpop.f32.mrf.mxu0
        %423 = vmatprep.mubr.f32.mxu0 0.0
        %424 = vmatmul.mubr.f32.gmra.mxu0 %v264
        %v425 = vpop.f32.mrf.mxu0
        %v426 = vadd.f32 %v287, %v425
        %v427 = vpop.f32.mrf.mxu0
        %428 = vmatprep.mubr.f32.mxu0 0.0
        %429 = vmatmul.mubr.f32.gmra.mxu0 %v265
        %v430 = vpop.f32.mrf.mxu0
        %v431 = vadd.f32 %v287, %v430
        %v432 = vpop.f32.mrf.mxu0
        %433 = vdwg.mxu0
        %v434 = vlaneseq
        %v435 = vand.u32 %v434, 127
        %436 = vmax.xlane.f32.xlu0 %v356
        %v437 = vpop.xlane.xlu0 %436
        %438 = vmax.xlane.f32.xlu0 %v361
        %v439 = vpop.xlane.xlu0 %438
        %440 = vmax.xlane.f32.xlu0 %v366
        %v441 = vpop.xlane.xlu0 %440
        %442 = vmax.xlane.f32.xlu0 %v371
        %v443 = vpop.xlane.xlu0 %442
        %444 = vmax.xlane.f32.xlu0 %v376
        %v445 = vpop.xlane.xlu0 %444
        %446 = vmax.xlane.f32.xlu0 %v381
        %v447 = vpop.xlane.xlu0 %446
        %448 = vmax.xlane.f32.xlu0 %v386
        %v449 = vpop.xlane.xlu0 %448
        %450 = vmax.xlane.f32.xlu0 %v391
        %v451 = vpop.xlane.xlu0 %450
        %452 = vmax.xlane.f32.xlu0 %v396
        %v453 = vpop.xlane.xlu0 %452
        %454 = vmax.xlane.f32.xlu0 %v401
        %v455 = vpop.xlane.xlu0 %454
        %456 = vmax.xlane.f32.xlu0 %v406
        %v457 = vpop.xlane.xlu0 %456
        %458 = vmax.xlane.f32.xlu0 %v411
        %v459 = vpop.xlane.xlu0 %458
        %460 = vmax.xlane.f32.xlu0 %v416
        %v461 = vpop.xlane.xlu0 %460
        %462 = vmax.xlane.f32.xlu0 %v421
        %v463 = vpop.xlane.xlu0 %462
        %464 = vmax.xlane.f32.xlu0 %v426
        %v465 = vpop.xlane.xlu0 %464
        %466 = vmax.xlane.f32.xlu0 %v431
        %v467 = vpop.xlane.xlu0 %466
        %vm468 = vcmp.eq.f32.partialorder %v356, %v437
        %vm469 = vcmp.eq.f32.partialorder %v361, %v439
        %vm470 = vcmp.eq.f32.partialorder %v366, %v441
        %vm471 = vcmp.eq.f32.partialorder %v371, %v443
        %vm472 = vcmp.eq.f32.partialorder %v376, %v445
        %vm473 = vcmp.eq.f32.partialorder %v381, %v447
        %vm474 = vcmp.eq.f32.partialorder %v386, %v449
        %vm475 = vcmp.eq.f32.partialorder %v391, %v451
        %vm476 = vcmp.eq.f32.partialorder %v396, %v453
        %vm477 = vcmp.eq.f32.partialorder %v401, %v455
        %vm478 = vcmp.eq.f32.partialorder %v406, %v457
        %vm479 = vcmp.eq.f32.partialorder %v411, %v459
        %vm480 = vcmp.eq.f32.partialorder %v416, %v461
        %vm481 = vcmp.eq.f32.partialorder %v421, %v463
        %vm482 = vcmp.eq.f32.partialorder %v426, %v465
        %vm483 = vcmp.eq.f32.partialorder %v431, %v467
        %v484 = vsel %vm468, %v435, 1073741824
        %v485 = vsel %vm469, %v435, 1073741824
        %v486 = vsel %vm470, %v435, 1073741824
        %v487 = vsel %vm471, %v435, 1073741824
        %v488 = vsel %vm472, %v435, 1073741824
        %v489 = vsel %vm473, %v435, 1073741824
        %v490 = vsel %vm474, %v435, 1073741824
        %v491 = vsel %vm475, %v435, 1073741824
        %v492 = vsel %vm476, %v435, 1073741824
        %v493 = vsel %vm477, %v435, 1073741824
        %v494 = vsel %vm478, %v435, 1073741824
        %v495 = vsel %vm479, %v435, 1073741824
        %v496 = vsel %vm480, %v435, 1073741824
        %v497 = vsel %vm481, %v435, 1073741824
        %v498 = vsel %vm482, %v435, 1073741824
        %v499 = vsel %vm483, %v435, 1073741824
        %v500 = vand.u32 %v484, 65535
        %v501 = vshra.s32 %v484, 16
        %v502 = vcvt.s32.f32 %v500
        %v503 = vcvt.s32.f32 %v501
        %504 = vmin.xlane.f32.xlu0 %v503
        %v505 = vpop.xlane.xlu0 %504
        %vm506 = vcmp.eq.f32.partialorder %v503, %v505
        %v507 = vsel %vm506, %v502, inf
        %508 = vmin.xlane.f32.xlu0 %v507
        %v509 = vpop.xlane.xlu0 %508
        %v510 = vcvt.f32.s32 %v509
        %v511 = vcvt.f32.s32 %v505
        %v512 = vshll.u32 %v511, 16
        %v513 = vadd.s32 %v512, %v510
        %v514 = vand.u32 %v485, 65535
        %v515 = vshra.s32 %v485, 16
        %v516 = vcvt.s32.f32 %v514
        %v517 = vcvt.s32.f32 %v515
        %518 = vmin.xlane.f32.xlu0 %v517
        %v519 = vpop.xlane.xlu0 %518
        %vm520 = vcmp.eq.f32.partialorder %v517, %v519
        %v521 = vsel %vm520, %v516, inf
        %522 = vmin.xlane.f32.xlu0 %v521
        %v523 = vpop.xlane.xlu0 %522
        %v524 = vcvt.f32.s32 %v523
        %v525 = vcvt.f32.s32 %v519
        %v526 = vshll.u32 %v525, 16
        %v527 = vadd.s32 %v526, %v524
        %v528 = vand.u32 %v486, 65535
        %v529 = vshra.s32 %v486, 16
        %v530 = vcvt.s32.f32 %v528
        %v531 = vcvt.s32.f32 %v529
        %532 = vmin.xlane.f32.xlu0 %v531
        %v533 = vpop.xlane.xlu0 %532
        %vm534 = vcmp.eq.f32.partialorder %v531, %v533
        %v535 = vsel %vm534, %v530, inf
        %536 = vmin.xlane.f32.xlu0 %v535
        %v537 = vpop.xlane.xlu0 %536
        %v538 = vcvt.f32.s32 %v537
        %v539 = vcvt.f32.s32 %v533
        %v540 = vshll.u32 %v539, 16
        %v541 = vadd.s32 %v540, %v538
        %v542 = vand.u32 %v487, 65535
        %v543 = vshra.s32 %v487, 16
        %v544 = vcvt.s32.f32 %v542
        %v545 = vcvt.s32.f32 %v543
        %546 = vmin.xlane.f32.xlu0 %v545
        %v547 = vpop.xlane.xlu0 %546
        %vm548 = vcmp.eq.f32.partialorder %v545, %v547
        %v549 = vsel %vm548, %v544, inf
        %550 = vmin.xlane.f32.xlu0 %v549
        %v551 = vpop.xlane.xlu0 %550
        %v552 = vcvt.f32.s32 %v551
        %v553 = vcvt.f32.s32 %v547
        %v554 = vshll.u32 %v553, 16
        %v555 = vadd.s32 %v554, %v552
        %v556 = vand.u32 %v488, 65535
        %v557 = vshra.s32 %v488, 16
        %v558 = vcvt.s32.f32 %v556
        %v559 = vcvt.s32.f32 %v557
        %560 = vmin.xlane.f32.xlu0 %v559
        %v561 = vpop.xlane.xlu0 %560
        %vm562 = vcmp.eq.f32.partialorder %v559, %v561
        %v563 = vsel %vm562, %v558, inf
        %564 = vmin.xlane.f32.xlu0 %v563
        %v565 = vpop.xlane.xlu0 %564
        %v566 = vcvt.f32.s32 %v565
        %v567 = vcvt.f32.s32 %v561
        %v568 = vshll.u32 %v567, 16
        %v569 = vadd.s32 %v568, %v566
        %v570 = vand.u32 %v489, 65535
        %v571 = vshra.s32 %v489, 16
        %v572 = vcvt.s32.f32 %v570
        %v573 = vcvt.s32.f32 %v571
        %574 = vmin.xlane.f32.xlu0 %v573
        %v575 = vpop.xlane.xlu0 %574
        %vm576 = vcmp.eq.f32.partialorder %v573, %v575
        %v577 = vsel %vm576, %v572, inf
        %578 = vmin.xlane.f32.xlu0 %v577
        %v579 = vpop.xlane.xlu0 %578
        %v580 = vcvt.f32.s32 %v579
        %v581 = vcvt.f32.s32 %v575
        %v582 = vshll.u32 %v581, 16
        %v583 = vadd.s32 %v582, %v580
        %v584 = vand.u32 %v490, 65535
        %v585 = vshra.s32 %v490, 16
        %v586 = vcvt.s32.f32 %v584
        %v587 = vcvt.s32.f32 %v585
        %588 = vmin.xlane.f32.xlu0 %v587
        %v589 = vpop.xlane.xlu0 %588
        %vm590 = vcmp.eq.f32.partialorder %v587, %v589
        %v591 = vsel %vm590, %v586, inf
        %592 = vmin.xlane.f32.xlu0 %v591
        %v593 = vpop.xlane.xlu0 %592
        %v594 = vcvt.f32.s32 %v593
        %v595 = vcvt.f32.s32 %v589
        %v596 = vshll.u32 %v595, 16
        %v597 = vadd.s32 %v596, %v594
        %v598 = vand.u32 %v491, 65535
        %v599 = vshra.s32 %v491, 16
        %v600 = vcvt.s32.f32 %v598
        %v601 = vcvt.s32.f32 %v599
        %602 = vmin.xlane.f32.xlu0 %v601
        %v603 = vpop.xlane.xlu0 %602
        %vm604 = vcmp.eq.f32.partialorder %v601, %v603
        %v605 = vsel %vm604, %v600, inf
        %606 = vmin.xlane.f32.xlu0 %v605
        %v607 = vpop.xlane.xlu0 %606
        %v608 = vcvt.f32.s32 %v607
        %v609 = vcvt.f32.s32 %v603
        %v610 = vshll.u32 %v609, 16
        %v611 = vadd.s32 %v610, %v608
        %v612 = vand.u32 %v492, 65535
        %v613 = vshra.s32 %v492, 16
        %v614 = vcvt.s32.f32 %v612
        %v615 = vcvt.s32.f32 %v613
        %616 = vmin.xlane.f32.xlu0 %v615
        %v617 = vpop.xlane.xlu0 %616
        %vm618 = vcmp.eq.f32.partialorder %v615, %v617
        %v619 = vsel %vm618, %v614, inf
        %620 = vmin.xlane.f32.xlu0 %v619
        %v621 = vpop.xlane.xlu0 %620
        %v622 = vcvt.f32.s32 %v621
        %v623 = vcvt.f32.s32 %v617
        %v624 = vshll.u32 %v623, 16
        %v625 = vadd.s32 %v624, %v622
        %v626 = vand.u32 %v493, 65535
        %v627 = vshra.s32 %v493, 16
        %v628 = vcvt.s32.f32 %v626
        %v629 = vcvt.s32.f32 %v627
        %630 = vmin.xlane.f32.xlu0 %v629
        %v631 = vpop.xlane.xlu0 %630
        %vm632 = vcmp.eq.f32.partialorder %v629, %v631
        %v633 = vsel %vm632, %v628, inf
        %634 = vmin.xlane.f32.xlu0 %v633
        %v635 = vpop.xlane.xlu0 %634
        %v636 = vcvt.f32.s32 %v635
        %v637 = vcvt.f32.s32 %v631
        %v638 = vshll.u32 %v637, 16
        %v639 = vadd.s32 %v638, %v636
        %v640 = vand.u32 %v494, 65535
        %v641 = vshra.s32 %v494, 16
        %v642 = vcvt.s32.f32 %v640
        %v643 = vcvt.s32.f32 %v641
        %644 = vmin.xlane.f32.xlu0 %v643
        %v645 = vpop.xlane.xlu0 %644
        %vm646 = vcmp.eq.f32.partialorder %v643, %v645
        %v647 = vsel %vm646, %v642, inf
        %648 = vmin.xlane.f32.xlu0 %v647
        %v649 = vpop.xlane.xlu0 %648
        %v650 = vcvt.f32.s32 %v649
        %v651 = vcvt.f32.s32 %v645
        %v652 = vshll.u32 %v651, 16
        %v653 = vadd.s32 %v652, %v650
        %v654 = vand.u32 %v495, 65535
        %v655 = vshra.s32 %v495, 16
        %v656 = vcvt.s32.f32 %v654
        %v657 = vcvt.s32.f32 %v655
        %658 = vmin.xlane.f32.xlu0 %v657
        %v659 = vpop.xlane.xlu0 %658
        %vm660 = vcmp.eq.f32.partialorder %v657, %v659
        %v661 = vsel %vm660, %v656, inf
        %662 = vmin.xlane.f32.xlu0 %v661
        %v663 = vpop.xlane.xlu0 %662
        %v664 = vcvt.f32.s32 %v663
        %v665 = vcvt.f32.s32 %v659
        %v666 = vshll.u32 %v665, 16
        %v667 = vadd.s32 %v666, %v664
        %v668 = vand.u32 %v496, 65535
        %v669 = vshra.s32 %v496, 16
        %v670 = vcvt.s32.f32 %v668
        %v671 = vcvt.s32.f32 %v669
        %672 = vmin.xlane.f32.xlu0 %v671
        %v673 = vpop.xlane.xlu0 %672
        %vm674 = vcmp.eq.f32.partialorder %v671, %v673
        %v675 = vsel %vm674, %v670, inf
        %676 = vmin.xlane.f32.xlu0 %v675
        %v677 = vpop.xlane.xlu0 %676
        %v678 = vcvt.f32.s32 %v677
        %v679 = vcvt.f32.s32 %v673
        %v680 = vshll.u32 %v679, 16
        %v681 = vadd.s32 %v680, %v678
        %v682 = vand.u32 %v497, 65535
        %v683 = vshra.s32 %v497, 16
        %v684 = vcvt.s32.f32 %v682
        %v685 = vcvt.s32.f32 %v683
        %686 = vmin.xlane.f32.xlu0 %v685
        %v687 = vpop.xlane.xlu0 %686
        %vm688 = vcmp.eq.f32.partialorder %v685, %v687
        %v689 = vsel %vm688, %v684, inf
        %690 = vmin.xlane.f32.xlu0 %v689
        %v691 = vpop.xlane.xlu0 %690
        %v692 = vcvt.f32.s32 %v691
        %v693 = vcvt.f32.s32 %v687
        %v694 = vshll.u32 %v693, 16
        %v695 = vadd.s32 %v694, %v692
        %v696 = vand.u32 %v498, 65535
        %v697 = vshra.s32 %v498, 16
        %v698 = vcvt.s32.f32 %v696
        %v699 = vcvt.s32.f32 %v697
        %700 = vmin.xlane.f32.xlu0 %v699
        %v701 = vpop.xlane.xlu0 %700
        %vm702 = vcmp.eq.f32.partialorder %v699, %v701
        %v703 = vsel %vm702, %v698, inf
        %704 = vmin.xlane.f32.xlu0 %v703
        %v705 = vpop.xlane.xlu0 %704
        %v706 = vcvt.f32.s32 %v705
        %v707 = vcvt.f32.s32 %v701
        %v708 = vshll.u32 %v707, 16
        %v709 = vadd.s32 %v708, %v706
        %v710 = vand.u32 %v499, 65535
        %v711 = vshra.s32 %v499, 16
        %v712 = vcvt.s32.f32 %v710
        %v713 = vcvt.s32.f32 %v711
        %714 = vmin.xlane.f32.xlu0 %v713
        %v715 = vpop.xlane.xlu0 %714
        %vm716 = vcmp.eq.f32.partialorder %v713, %v715
        %v717 = vsel %vm716, %v712, inf
        %718 = vmin.xlane.f32.xlu0 %v717
        %v719 = vpop.xlane.xlu0 %718
        %v720 = vcvt.f32.s32 %v719
        %v721 = vcvt.f32.s32 %v715
        %v722 = vshll.u32 %v721, 16
        %v723 = vadd.s32 %v722, %v720
        %vm724 = vcmp.eq.s32.totalorder %v435, %v513
        %vm725 = vcmp.eq.s32.totalorder %v435, %v527
        %vm726 = vcmp.eq.s32.totalorder %v435, %v541
        %vm727 = vcmp.eq.s32.totalorder %v435, %v555
        %vm728 = vcmp.eq.s32.totalorder %v435, %v569
        %vm729 = vcmp.eq.s32.totalorder %v435, %v583
        %vm730 = vcmp.eq.s32.totalorder %v435, %v597
        %vm731 = vcmp.eq.s32.totalorder %v435, %v611
        %vm732 = vcmp.eq.s32.totalorder %v435, %v625
        %vm733 = vcmp.eq.s32.totalorder %v435, %v639
        %vm734 = vcmp.eq.s32.totalorder %v435, %v653
        %vm735 = vcmp.eq.s32.totalorder %v435, %v667
        %vm736 = vcmp.eq.s32.totalorder %v435, %v681
        %vm737 = vcmp.eq.s32.totalorder %v435, %v695
        %vm738 = vcmp.eq.s32.totalorder %v435, %v709
        %vm739 = vcmp.eq.s32.totalorder %v435, %v723
        %v740 = vsel %vm724, 1, 0
        %v741 = vsel %vm725, 1, 0
        %v742 = vsel %vm726, 1, 0
        %v743 = vsel %vm727, 1, 0
        %v744 = vsel %vm728, 1, 0
        %v745 = vsel %vm729, 1, 0
        %v746 = vsel %vm730, 1, 0
        %v747 = vsel %vm731, 1, 0
        %v748 = vsel %vm732, 1, 0
        %v749 = vsel %vm733, 1, 0
        %v750 = vsel %vm734, 1, 0
        %v751 = vsel %vm735, 1, 0
        %v752 = vsel %vm736, 1, 0
        %v753 = vsel %vm737, 1, 0
        %v754 = vsel %vm738, 1, 0
        %v755 = vsel %vm739, 1, 0
        %v756 = vcvt.s32.f32 %v740
        %v757 = vcvt.s32.f32 %v741
        %v758 = vcvt.s32.f32 %v742
        %v759 = vcvt.s32.f32 %v743
        %v760 = vcvt.s32.f32 %v744
        %v761 = vcvt.s32.f32 %v745
        %v762 = vcvt.s32.f32 %v746
        %v763 = vcvt.s32.f32 %v747
        %v764 = vcvt.s32.f32 %v748
        %v765 = vcvt.s32.f32 %v749
        %v766 = vcvt.s32.f32 %v750
        %v767 = vcvt.s32.f32 %v751
        %v768 = vcvt.s32.f32 %v752
        %v769 = vcvt.s32.f32 %v753
        %v770 = vcvt.s32.f32 %v754
        %v771 = vcvt.s32.f32 %v755
        %v772 = vpack.c.bf16 %v757, %v756
        %v773 = vpack.c.bf16 %v759, %v758
        %v774 = vpack.c.bf16 %v761, %v760
        %v775 = vpack.c.bf16 %v763, %v762
        %v776 = vpack.c.bf16 %v765, %v764
        %v777 = vpack.c.bf16 %v767, %v766
        %v778 = vpack.c.bf16 %v769, %v768
        %v779 = vpack.c.bf16 %v771, %v770
        %v780 = vld [vmem:[#allocation6] sm:$0xf]
        %v781 = vld [vmem:[#allocation6 + $0x4] sm:$0xf]
        %v782 = vld [vmem:[#allocation6 + $0x8] sm:$0xf]
        %v783 = vld [vmem:[#allocation6 + $0xc] sm:$0xf]
        %v784 = vld [vmem:[#allocation6 + $0x10] sm:$0xf]
        %v785 = vld [vmem:[#allocation6 + $0x14] sm:$0xf]
        %v786 = vld [vmem:[#allocation6 + $0x18] sm:$0xf]
        %v787 = vld [vmem:[#allocation6 + $0x1c] sm:$0xf]
        %v788 = vld [vmem:[#allocation6 + $0x20] sm:$0xf]
        %v789 = vld [vmem:[#allocation6 + $0x24] sm:$0xf]
        %v790 = vld [vmem:[#allocation6 + $0x28] sm:$0xf]
        %v791 = vld [vmem:[#allocation6 + $0x2c] sm:$0xf]
        %v792 = vld [vmem:[#allocation6 + $0x30] sm:$0xf]
        %v793 = vld [vmem:[#allocation6 + $0x34] sm:$0xf]
        %v794 = vld [vmem:[#allocation6 + $0x38] sm:$0xf]
        %v795 = vld [vmem:[#allocation6 + $0x3c] sm:$0xf]
        %v812 = vunpack.c.l.b16 %v780
        %v813 = vunpack.c.l.b16 %v781
        %v814 = vunpack.c.l.b16 %v782
        %v815 = vunpack.c.l.b16 %v783
        %v816 = vunpack.c.l.b16 %v784
        %v817 = vunpack.c.l.b16 %v785
        %v818 = vunpack.c.l.b16 %v786
        %v819 = vunpack.c.l.b16 %v787
        %v820 = vunpack.c.l.b16 %v788
        %v821 = vunpack.c.l.b16 %v789
        %v822 = vunpack.c.l.b16 %v790
        %v823 = vunpack.c.l.b16 %v791
        %v824 = vunpack.c.l.b16 %v792
        %v825 = vunpack.c.l.b16 %v793
        %v826 = vunpack.c.l.b16 %v794
        %v827 = vunpack.c.l.b16 %v795
        %v828 = vpack.c.b16 %v813, %v812
        %v829 = vpack.c.b16 %v815, %v814
        %v830 = vpack.c.b16 %v817, %v816
        %v831 = vpack.c.b16 %v819, %v818
        %v832 = vpack.c.b16 %v821, %v820
        %v833 = vpack.c.b16 %v823, %v822
        %v834 = vpack.c.b16 %v825, %v824
        %v835 = vpack.c.b16 %v827, %v826
        %844 = vmatprep.subr.bf16.mxu0 0
        %845 = vmatpush1.bf16.msra.mxu0 %v835
        %846 = vmatprep.subr.bf16.mxu0 0
        %847 = vmatpush1.bf16.msra.mxu0 %v834
        %848 = vmatprep.subr.bf16.mxu0 0
        %849 = vmatpush1.bf16.msra.mxu0 %v833
        %850 = vmatprep.subr.bf16.mxu0 0
        %851 = vmatpush1.bf16.msra.mxu0 %v832
        %852 = vmatprep.subr.bf16.mxu0 0
        %853 = vmatpush1.bf16.msra.mxu0 %v831
        %854 = vmatprep.subr.bf16.mxu0 0
        %855 = vmatpush1.bf16.msra.mxu0 %v830
        %856 = vmatprep.subr.bf16.mxu0 0
        %857 = vmatpush1.bf16.msra.mxu0 %v829
        %858 = vmatprep.subr.bf16.mxu0 0
        %859 = vmatpush1.bf16.msra.mxu0 %v828
        %860 = vmatprep.subr.bf16.mxu0 0
        %861 = vmatpush2.bf16.msra.mxu0 0
        %862 = vmatprep.subr.bf16.mxu0 0
        %863 = vmatpush2.bf16.msra.mxu0 0
        %864 = vmatprep.subr.bf16.mxu0 0
        %865 = vmatpush2.bf16.msra.mxu0 0
        %866 = vmatprep.subr.bf16.mxu0 0
        %867 = vmatpush2.bf16.msra.mxu0 0
        %868 = vmatprep.subr.bf16.mxu0 0
        %869 = vmatpush2.bf16.msra.mxu0 0
        %870 = vmatprep.subr.bf16.mxu0 0
        %871 = vmatpush2.bf16.msra.mxu0 0
        %872 = vmatprep.subr.bf16.mxu0 0
        %873 = vmatpush2.bf16.msra.mxu0 0
        %874 = vmatprep.subr.bf16.mxu0 0
        %875 = vmatpush2.bf16.msra.mxu0 0
        %876 = vmatprep.mubr.bf16.mxu0 0
        %877 = vmatmul.mubr.bf16.gmra.mxu0 %v772
        %v878 = vpop.f32.mrf.mxu0
        %v879 = vadd.f32 0.0, %v878
        %v880 = vpop.f32.mrf.mxu0
        %v881 = vpop.f32.mrf.mxu0
        %v882 = vadd.f32 0.0, %v881
        %v883 = vpop.f32.mrf.mxu0
        %884 = vmatprep.mubr.bf16.mxu0 0
        %885 = vmatmul.mubr.bf16.gmra.mxu0 %v773
        %v886 = vpop.f32.mrf.mxu0
        %v887 = vadd.f32 0.0, %v886
        %v888 = vpop.f32.mrf.mxu0
        %v889 = vpop.f32.mrf.mxu0
        %v890 = vadd.f32 0.0, %v889
        %v891 = vpop.f32.mrf.mxu0
        %892 = vmatprep.mubr.bf16.mxu0 0
        %893 = vmatmul.mubr.bf16.gmra.mxu0 %v774
        %v894 = vpop.f32.mrf.mxu0
        %v895 = vadd.f32 0.0, %v894
        %v896 = vpop.f32.mrf.mxu0
        %v897 = vpop.f32.mrf.mxu0
        %v898 = vadd.f32 0.0, %v897
        %v899 = vpop.f32.mrf.mxu0
        %900 = vmatprep.mubr.bf16.mxu0 0
        %901 = vmatmul.mubr.bf16.gmra.mxu0 %v775
        %v902 = vpop.f32.mrf.mxu0
        %v903 = vadd.f32 0.0, %v902
        %v904 = vpop.f32.mrf.mxu0
        %v905 = vpop.f32.mrf.mxu0
        %v906 = vadd.f32 0.0, %v905
        %v907 = vpop.f32.mrf.mxu0
        %908 = vmatprep.mubr.bf16.mxu0 0
        %909 = vmatmul.mubr.bf16.gmra.mxu0 %v776
        %v910 = vpop.f32.mrf.mxu0
        %v911 = vadd.f32 0.0, %v910
        %v912 = vpop.f32.mrf.mxu0
        %v913 = vpop.f32.mrf.mxu0
        %v914 = vadd.f32 0.0, %v913
        %v915 = vpop.f32.mrf.mxu0
        %916 = vmatprep.mubr.bf16.mxu0 0
        %917 = vmatmul.mubr.bf16.gmra.mxu0 %v777
        %v918 = vpop.f32.mrf.mxu0
        %v919 = vadd.f32 0.0, %v918
        %v920 = vpop.f32.mrf.mxu0
        %v921 = vpop.f32.mrf.mxu0
        %v922 = vadd.f32 0.0, %v921
        %v923 = vpop.f32.mrf.mxu0
        %924 = vmatprep.mubr.bf16.mxu0 0
        %925 = vmatmul.mubr.bf16.gmra.mxu0 %v778
        %v926 = vpop.f32.mrf.mxu0
        %v927 = vadd.f32 0.0, %v926
        %v928 = vpop.f32.mrf.mxu0
        %v929 = vpop.f32.mrf.mxu0
        %v930 = vadd.f32 0.0, %v929
        %v931 = vpop.f32.mrf.mxu0
        %932 = vmatprep.mubr.bf16.mxu0 0
        %933 = vmatmul.mubr.bf16.gmra.mxu0 %v779
        %v934 = vpop.f32.mrf.mxu0
        %v935 = vadd.f32 0.0, %v934
        %v936 = vpop.f32.mrf.mxu0
        %v937 = vpop.f32.mrf.mxu0
        %v938 = vadd.f32 0.0, %v937
        %v939 = vpop.f32.mrf.mxu0
        %940 = vdwg.mxu0
        %941 = vst [vmem:[%s247] sm:$0xff] %v879
        %942 = vst [vmem:[%s247 + $0x8] sm:$0xff] %v882
        %943 = vst [vmem:[%s247 + $0x10] sm:$0xff] %v887
        %944 = vst [vmem:[%s247 + $0x18] sm:$0xff] %v890
        %945 = vst [vmem:[%s247 + $0x20] sm:$0xff] %v895
        %946 = vst [vmem:[%s247 + $0x28] sm:$0xff] %v898
        %947 = vst [vmem:[%s247 + $0x30] sm:$0xff] %v903
        %948 = vst [vmem:[%s247 + $0x38] sm:$0xff] %v906
        %949 = vst [vmem:[%s247 + $0x40] sm:$0xff] %v911
        %950 = vst [vmem:[%s247 + $0x48] sm:$0xff] %v914
        %951 = vst [vmem:[%s247 + $0x50] sm:$0xff] %v919
        %952 = vst [vmem:[%s247 + $0x58] sm:$0xff] %v922
        %953 = vst [vmem:[%s247 + $0x60] sm:$0xff] %v927
        %954 = vst [vmem:[%s247 + $0x68] sm:$0xff] %v930
        %955 = vst [vmem:[%s247 + $0x70] sm:$0xff] %v935
        %956 = vst [vmem:[%s247 + $0x78] sm:$0xff] %v938
        %s957 = smul.u32 16, %s19
        %p958 = scmp.lt.s32.totalorder %s957, 63
        %s959 = scalar_select %p958, %s957, 63
        %s960 = smul.addr %s959, 8
        %s961 = scalar_lea.vmem %s4, %s960
        // Predicated region
        $region49: #{adapter.1} parent=35 // pred_check
          %p962 = pneg %p126
        $region50: #{adapter.1} parent=35 // pred_check_branch
          %964 = sbr.rel (%p962) target = $region52
        $region51: #{adapter.1} parent=35 // pred_region
          %s965 = smul.u32 16, %s19
        $region52: #{adapter.1} parent=35 // pred_fallthru
          _
      $region36: #{adapter.1} parent=5 // pred_fallthru
        _
      %p966 = scmp.le.s32.totalorder 2, %s14
      // Predicated region
      $region53: #{adapter.1} parent=5 // pred_check
        %p967 = pneg %p966
      $region54: #{adapter.1} parent=5 // pred_check_branch
        %969 = sbr.rel (%p967) target = $region56
      $region55: #{adapter.1} parent=5 // pred_region
        %s970 = ssub.s32 %s14, 2
        // Predicated region
        $region57: #{adapter.1} parent=55 // pred_check
          %p971 = pneg %p132
        $region58: #{adapter.1} parent=55 // pred_check_branch
          %973 = sbr.rel (%p971) target = $region60
        $region59: #{adapter.1} parent=55 // pred_region
          %s974 = smul.u32 16, %s20
          %p975 = scmp.lt.s32.totalorder %s974, 63
          %s976 = scalar_select %p975, %s974, 63
          %s977 = smul.addr %s976, 8
          %s978 = scalar_lea.vmem %s4, %s977
        $region60: #{adapter.1} parent=55 // pred_fallthru
          _
      $region56: #{adapter.1} parent=5 // pred_fallthru
        _
    $region6: #{adapter.1} parent=1 // loop_footer
      %s18 = sadd.s32 1, %s14
    $region7: #{adapter.1} parent=1 // loop_footer_branch
      %13 = sbr.rel target = $region3
    $region8: #{adapter.1} parent=1 // loop_exit
      _
    %979 = vsyncpa [#allocation3], 1
    %s980 = scalar_lea.sflag [#allocation3], 1
    %981 = vsyncpa %s980, 1
    %982 = vsyncpa [#allocation5], 1

</llo_original>
